<compile_context>
chip_gen: v5e
topology: v5e:2x2
jax: 0.10.0
libtpu: 0.0.40
codegen_flags: <defaults>
</compile_context>

<pallas_src>
import functools

import jax
import jax.numpy as jnp
from jax.experimental import pallas as pl
from jax.experimental.pallas import tpu as pltpu


# ----------------------------------------------------------------------------
# Fused kernel: transformer block (CLS-only tail) -> MLP head, whole batch.
#
# Inputs (all full-array VMEM blocks, no grid):
#   x_ref      (S*B, Hp) f32   token-major activation slab; rows 0..B-1 are CLS
#   mask_ref   (B, S*B)  f32   1 iff key token is valid AND in the same sample
#   vecs_ref   (8, P)    f32   rows: 0 ln1_g, 1 ln1_b, 2 ln2_g, 3 ln2_b,
#                              4 ffn_b1, 5 ffn_b2, 6 head_b1, 7 head_b2
#   w_attn_ref (Hp, 4*Hp) bf16 fused [K | V | Q | O] projection weights
#   w1_ref     (Hp, Fp)  bf16  FFN up
#   w2_ref     (Fp, Hp)  bf16  FFN down
#   hw1_ref    (Hp, Mp)  bf16  MLP head layer 1
#   hw2_ref    (Mp, Cp)  bf16  MLP head layer 2
# Output:
#   out_ref    (B, Cp)   f32   lane-dense padded class logits
# ----------------------------------------------------------------------------
def _fused_cls_kernel(x_ref, mask_ref, vecs_ref,
                      w_attn_ref, w1_ref, w2_ref, hw1_ref, hw2_ref,
                      out_ref, *, batch, h_logical):
    B = batch
    Hp = x_ref.shape[-1]
    Fp = w1_ref.shape[1]
    Mp = hw1_ref.shape[1]
    Cp = hw2_ref.shape[1]

    x = x_ref[...].astype(jnp.float32)                      # (S*B, Hp)

    # Lane mask selecting the logical hidden dims; padded lanes remain zero.
    lane = jax.lax.broadcasted_iota(jnp.int32, (1, Hp), 1)
    hmask = (lane < h_logical).astype(jnp.float32)          # (1, Hp)
    inv_h = 1.0 / float(h_logical)

    # Stacked vector params (tiny static row slices of one buffer).
    ln1_g = vecs_ref[0:1, :Hp]
    ln1_b = vecs_ref[1:2, :Hp]
    ln2_g = vecs_ref[2:3, :Hp]
    ln2_b = vecs_ref[3:4, :Hp]
    b1 = vecs_ref[4:5, :Fp]
    b2 = vecs_ref[5:6, :Hp]
    hb1 = vecs_ref[6:7, :Mp]
    hb2 = vecs_ref[7:8, :Cp]

    def layernorm(v, g, b):
        # Masked LN over the logical H lanes only (padded lanes of v are zero).
        mu = jnp.sum(v, axis=-1, keepdims=True) * inv_h
        c = (v - mu) * hmask
        var = jnp.sum(c * c, axis=-1, keepdims=True) * inv_h
        return c * jax.lax.rsqrt(var + 1e-5) * g + b

    def mm(a, w):
        # bf16 operands feed the MXU; accumulate in f32 (v5e-safe split:
        # element-wise math stays f32, only MXU operands are bf16).
        return jnp.dot(a.astype(jnp.bfloat16), w,
                       preferred_element_type=jnp.float32)

    # ---- pre-LN + K/V projection for ALL tokens (only part needing all rows) --
    h1 = layernorm(x, ln1_g, ln1_b)                         # (S*B, Hp)
    kv = mm(h1, w_attn_ref[:, :2 * Hp])                     # (S*B, 2*Hp)
    k = kv[:, :Hp]
    v = kv[:, Hp:]

    # ---- CLS-only query / attention ----
    x_cls = x[:B, :]                                        # (B, Hp)
    h1_cls = h1[:B, :]                                      # (B, Hp)
    q = mm(h1_cls, w_attn_ref[:, 2 * Hp:3 * Hp])            # (B, Hp)

    # scores = q_cls @ K^T  -> (B, S*B), single 2-D matmul (no batched einsum).
    scores = jax.lax.dot_general(
        q.astype(jnp.bfloat16), k.astype(jnp.bfloat16),
        (((1,), (1,)), ((), ())),
        preferred_element_type=jnp.float32)
    scale = 1.0 / (float(h_logical) ** 0.5)
    # Additive bias: -1e9 on padded keys AND on keys of other samples.
    scores = scores * scale + (mask_ref[...] - 1.0) * 1e9
    scores = scores - jnp.max(scores, axis=-1, keepdims=True)
    p = jnp.exp(scores)
    p = p / jnp.sum(p, axis=-1, keepdims=True)              # exact divide (tiny)

    attn = jnp.dot(p.astype(jnp.bfloat16), v.astype(jnp.bfloat16),
                   preferred_element_type=jnp.float32)      # (B, Hp)
    y = x_cls + mm(attn, w_attn_ref[:, 3 * Hp:])            # residual, CLS rows only

    # ---- feed-forward (CLS rows only) ----
    h2 = layernorm(y, ln2_g, ln2_b)
    f = mm(h2, w1_ref[...]) + b1
    # NOTE: tanh-approx GELU (== PyTorch nn.GELU(approximate='tanh')); gelu(0)=0
    # so padded lanes stay exactly zero.
    f = jax.nn.gelu(f)
    y = y + mm(f, w2_ref[...]) + b2                         # (B, Hp)

    # ---- fused MLP head (Linear -> ReLU -> Linear) on the CLS rows ----
    hh = jnp.maximum(mm(y, hw1_ref[...]) + hb1, 0.0)        # (B, Mp)
    out = mm(hh, hw2_ref[...]) + hb2                        # (B, Cp), lane-dense
    out_ref[...] = out.astype(out_ref.dtype)


# ----------------------------------------------------------------------------
# Merge_Model_V.forward equivalent
# ----------------------------------------------------------------------------
def merge_model_v_forward(input_ids, attention_mask, params, *,
                          hidden_dim, num_classes):
    B, S = input_ids.shape
    Hp = params["w_attn"].shape[0]
    Cp = params["head_w2"].shape[1]

    # Frozen-LLM embedding (JAX glue): token + positional embedding; padded
    # hidden lanes are zero.
    emb = params["tok_emb"][input_ids] + params["pos_emb"][:S][None, :, :]   # (B,S,Hp)
    # Token-major (S, B) row order so the B CLS rows are the first B contiguous
    # rows of the 2-D slab (no strided / 3-D indexing inside the kernel).
    x = jnp.transpose(emb, (1, 0, 2)).reshape(S * B, Hp)

    # Combined key mask (B, S*B): key j = s*B + b_k is attendable by query
    # sample b iff attention_mask[b_k, s] == 1 and b_k == b.
    m = attention_mask.astype(jnp.float32)                  # (B, S)
    same = jnp.eye(B, dtype=jnp.float32)                    # (B, B)
    key_mask = (m.T[None, :, :] * same[:, None, :]).reshape(B, S * B)

    kernel = functools.partial(_fused_cls_kernel, batch=B, h_logical=hidden_dim)
    out_padded = pl.pallas_call(
        kernel,
        out_shape=jax.ShapeDtypeStruct((B, Cp), jnp.float32),
        compiler_params=pltpu.CompilerParams(vmem_limit_bytes=32 * 1024 * 1024),
        # Gridless: tiny resident footprint (<1 MiB).  For large-batch
        # throughput, add a row-tile grid (M>=128 rows v5e, >=256 v6e/v7x) with
        # constant-index_map weight BlockSpecs and dimension_semantics=
        # ("parallel",...) so v7x shards across both TensorCores.
    )(x, key_mask, params["vecs"], params["w_attn"],
      params["w1"], params["w2"], params["head_w1"], params["head_w2"])

    # Strip lane padding from the class dim.
    return out_padded[:, :num_classes]


# ----------------------------------------------------------------------------
# Deterministic parameter init (logical sizes, zero-padded to 128 lanes, then
# consolidated into few buffers to minimize per-call DMA descriptors).
# ----------------------------------------------------------------------------
def _round_up(n, m=128):
    return ((n + m - 1) // m) * m


def _pad2(a, rows, cols):
    return jnp.pad(a, ((0, rows - a.shape[0]), (0, cols - a.shape[1])))


def make_params(key, vocab, S, H, F, M, C):
    ks = jax.random.split(key, 10)
    n = lambda k, shape: jax.random.normal(k, shape, jnp.float32) * 0.02
    Hp, Fp, Mp, Cp = _round_up(H), _round_up(F), _round_up(M), _round_up(C)
    P = max(Hp, Fp, Mp, Cp)
    bf = jnp.bfloat16

    wq, wk, wv = n(ks[2], (H, H)), n(ks[3], (H, H)), n(ks[4], (H, H))
    wo = n(ks[5], (H, H))

    # Stacked (8, P) f32 vector params.  Rows:
    #   0 ln1_g, 1 ln1_b, 2 ln2_g, 3 ln2_b, 4 ffn_b1, 5 ffn_b2, 6 head_b1, 7 head_b2
    ln_gamma = _pad2(jnp.ones((1, H), jnp.float32), 1, P)[0]
    vecs = jnp.zeros((8, P), jnp.float32).at[0].set(ln_gamma).at[2].set(ln_gamma)

    return {
        # embeddings (f32; padded hidden lanes are zero)
        "tok_emb": _pad2(n(ks[0], (vocab, H)), vocab, Hp),
        "pos_emb": _pad2(n(ks[1], (S, H)), S, Hp),
        # stacked LN/bias vectors
        "vecs": vecs,
        # fused attention weights [K | V | Q | O], (Hp, 4*Hp) bf16
        "w_attn": jnp.concatenate(
            [_pad2(wk, Hp, Hp), _pad2(wv, Hp, Hp),
             _pad2(wq, Hp, Hp), _pad2(wo, Hp, Hp)], axis=1).astype(bf),
        # FFN
        "w1": _pad2(n(ks[6], (H, F)), Hp, Fp).astype(bf),
        "w2": _pad2(n(ks[7], (F, H)), Fp, Hp).astype(bf),
        # MLP head
        "head_w1": _pad2(n(ks[8], (H, M)), Hp, Mp).astype(bf),
        "head_w2": _pad2(n(ks[9], (M, C)), Mp, Cp).astype(bf),
    }


if __name__ == "__main__":
    B, S, H = 2, 8, 32          # batch, sequence_length, hidden
    VOCAB, FFN, MLP_HIDDEN, NUM_CLASSES = 64, 64, 32, 4

    key = jax.random.PRNGKey(0)
    k_ids, k_params = jax.random.split(key)

    params = make_params(k_params, VOCAB, S, H, FFN, MLP_HIDDEN, NUM_CLASSES)

    input_ids = jax.random.randint(k_ids, (B, S), 0, VOCAB, dtype=jnp.int32)
    attention_mask = jnp.ones((B, S), jnp.int32).at[1, 6:].set(0)  # pad tail of sample 1

    fwd = jax.jit(functools.partial(merge_model_v_forward, params=params,
                                    hidden_dim=H, num_classes=NUM_CLASSES))
    out = fwd(input_ids, attention_mask)
    jax.block_until_ready(out)

    assert out.shape == (B, NUM_CLASSES) and out.dtype == jnp.float32
    assert bool(jnp.all(jnp.isfinite(out)))
    print("KERNEL_OK")
</pallas_src>

<mosaic_0001>
module attributes {stable_mosaic.version = 11 : i64} {
  func.func @_fused_cls_kernel(%arg0: memref<16x128xf32, #tpu.memory_space<vmem>>, %arg1: memref<2x16xf32, #tpu.memory_space<vmem>>, %arg2: memref<8x128xf32, #tpu.memory_space<vmem>>, %arg3: memref<128x512xbf16, #tpu.memory_space<vmem>>, %arg4: memref<128x128xbf16, #tpu.memory_space<vmem>>, %arg5: memref<128x128xbf16, #tpu.memory_space<vmem>>, %arg6: memref<128x128xbf16, #tpu.memory_space<vmem>>, %arg7: memref<128x128xbf16, #tpu.memory_space<vmem>>, %arg8: memref<2x128xf32, #tpu.memory_space<vmem>>) attributes {dimension_semantics = [], scalar_prefetch = 0 : i64, scratch_operands = 0 : i64, tpu.core_type = #tpu.core_type<tc>} {
    %c0 = arith.constant 0 : index
    %c0_0 = arith.constant 0 : index
    %0 = vector.load %arg0[%c0, %c0_0] : memref<16x128xf32, #tpu.memory_space<vmem>>, vector<16x128xf32>
    %1 = tpu.iota {dimensions = array<i32: 1>} : vector<1x128xi32>
    %c32_i32 = arith.constant 32 : i32
    %2 = vector.broadcast %c32_i32 : i32 to vector<1x128xi32>
    %3 = arith.cmpi slt, %1, %2 : vector<1x128xi32>
    %4 = arith.extui %3 : vector<1x128xi1> to vector<1x128xi32>
    %5 = arith.sitofp %4 : vector<1x128xi32> to vector<1x128xf32>
    %c0_1 = arith.constant 0 : index
    %c0_2 = arith.constant 0 : index
    %6 = vector.load %arg2[%c0_1, %c0_2] : memref<8x128xf32, #tpu.memory_space<vmem>>, vector<1x128xf32>
    %c1 = arith.constant 1 : index
    %c0_3 = arith.constant 0 : index
    %7 = vector.load %arg2[%c1, %c0_3] : memref<8x128xf32, #tpu.memory_space<vmem>>, vector<1x128xf32>
    %c2 = arith.constant 2 : index
    %c0_4 = arith.constant 0 : index
    %8 = vector.load %arg2[%c2, %c0_4] : memref<8x128xf32, #tpu.memory_space<vmem>>, vector<1x128xf32>
    %c3 = arith.constant 3 : index
    %c0_5 = arith.constant 0 : index
    %9 = vector.load %arg2[%c3, %c0_5] : memref<8x128xf32, #tpu.memory_space<vmem>>, vector<1x128xf32>
    %c4 = arith.constant 4 : index
    %c0_6 = arith.constant 0 : index
    %10 = vector.load %arg2[%c4, %c0_6] : memref<8x128xf32, #tpu.memory_space<vmem>>, vector<1x128xf32>
    %c5 = arith.constant 5 : index
    %c0_7 = arith.constant 0 : index
    %11 = vector.load %arg2[%c5, %c0_7] : memref<8x128xf32, #tpu.memory_space<vmem>>, vector<1x128xf32>
    %c6 = arith.constant 6 : index
    %c0_8 = arith.constant 0 : index
    %12 = vector.load %arg2[%c6, %c0_8] : memref<8x128xf32, #tpu.memory_space<vmem>>, vector<1x128xf32>
    %c7 = arith.constant 7 : index
    %c0_9 = arith.constant 0 : index
    %13 = vector.load %arg2[%c7, %c0_9] : memref<8x128xf32, #tpu.memory_space<vmem>>, vector<1x128xf32>
    %cst = arith.constant dense<0.000000e+00> : vector<16xf32>
    %14 = vector.multi_reduction <add>, %0, %cst [1] : vector<16x128xf32> to vector<16xf32>
    %15 = vector.shape_cast %14 : vector<16xf32> to vector<16x1xf32>
    %cst_10 = arith.constant 3.125000e-02 : f32
    %16 = vector.broadcast %cst_10 : f32 to vector<16x1xf32>
    %17 = arith.mulf %15, %16 : vector<16x1xf32>
    %18 = vector.broadcast %17 : vector<16x1xf32> to vector<16x128xf32>
    %19 = arith.subf %0, %18 : vector<16x128xf32>
    %20 = vector.broadcast %5 : vector<1x128xf32> to vector<16x128xf32>
    %21 = arith.mulf %19, %20 : vector<16x128xf32>
    %22 = arith.mulf %21, %21 : vector<16x128xf32>
    %cst_11 = arith.constant dense<0.000000e+00> : vector<16xf32>
    %23 = vector.multi_reduction <add>, %22, %cst_11 [1] : vector<16x128xf32> to vector<16xf32>
    %24 = vector.shape_cast %23 : vector<16xf32> to vector<16x1xf32>
    %cst_12 = arith.constant 3.125000e-02 : f32
    %25 = vector.broadcast %cst_12 : f32 to vector<16x1xf32>
    %26 = arith.mulf %24, %25 : vector<16x1xf32>
    %cst_13 = arith.constant 9.99999974E-6 : f32
    %27 = vector.broadcast %cst_13 : f32 to vector<16x1xf32>
    %28 = arith.addf %26, %27 : vector<16x1xf32>
    %29 = math.rsqrt %28 : vector<16x1xf32>
    %30 = vector.broadcast %29 : vector<16x1xf32> to vector<16x128xf32>
    %31 = arith.mulf %21, %30 : vector<16x128xf32>
    %32 = vector.broadcast %6 : vector<1x128xf32> to vector<16x128xf32>
    %33 = arith.mulf %31, %32 : vector<16x128xf32>
    %34 = vector.broadcast %7 : vector<1x128xf32> to vector<16x128xf32>
    %35 = arith.addf %33, %34 : vector<16x128xf32>
    %c0_14 = arith.constant 0 : index
    %c0_15 = arith.constant 0 : index
    %36 = vector.load %arg3[%c0_14, %c0_15] : memref<128x512xbf16, #tpu.memory_space<vmem>>, vector<128x256xbf16>
    %37 = arith.truncf %35 : vector<16x128xf32> to vector<16x128xbf16>
    %cst_16 = arith.constant dense<0.000000e+00> : vector<16x256xf32>
    %38 = tpu.matmul %37, %36, %cst_16 {dimension_numbers = #tpu.dot_dimension_numbers<[1], [0], [0], [1], [0, 0, 1, 1], [], []>} : vector<16x128xbf16>, vector<128x256xbf16>, vector<16x256xf32> -> vector<16x256xf32>
    %39 = vector.extract_strided_slice %38 {offsets = [0, 0], sizes = [16, 128], strides = [1, 1]} : vector<16x256xf32> to vector<16x128xf32>
    %40 = vector.extract_strided_slice %38 {offsets = [0, 128], sizes = [16, 128], strides = [1, 1]} : vector<16x256xf32> to vector<16x128xf32>
    %41 = vector.extract_strided_slice %0 {offsets = [0, 0], sizes = [2, 128], strides = [1, 1]} : vector<16x128xf32> to vector<2x128xf32>
    %42 = vector.extract_strided_slice %35 {offsets = [0, 0], sizes = [2, 128], strides = [1, 1]} : vector<16x128xf32> to vector<2x128xf32>
    %c0_17 = arith.constant 0 : index
    %c256 = arith.constant 256 : index
    %43 = vector.load %arg3[%c0_17, %c256] : memref<128x512xbf16, #tpu.memory_space<vmem>>, vector<128x128xbf16>
    %44 = arith.truncf %42 : vector<2x128xf32> to vector<2x128xbf16>
    %cst_18 = arith.constant dense<0.000000e+00> : vector<2x128xf32>
    %45 = tpu.matmul %44, %43, %cst_18 {dimension_numbers = #tpu.dot_dimension_numbers<[1], [0], [0], [1], [0, 0, 1, 1], [], []>} : vector<2x128xbf16>, vector<128x128xbf16>, vector<2x128xf32> -> vector<2x128xf32>
    %46 = arith.truncf %45 : vector<2x128xf32> to vector<2x128xbf16>
    %47 = arith.truncf %39 : vector<16x128xf32> to vector<16x128xbf16>
    %cst_19 = arith.constant dense<0.000000e+00> : vector<2x16xf32>
    %48 = tpu.matmul %46, %47, %cst_19 {dimension_numbers = #tpu.dot_dimension_numbers<[1], [1], [0], [0], [0, 0, 1, 0], [], []>} : vector<2x128xbf16>, vector<16x128xbf16>, vector<2x16xf32> -> vector<2x16xf32>
    %cst_20 = arith.constant 0.176776692 : f32
    %49 = vector.broadcast %cst_20 : f32 to vector<2x16xf32>
    %50 = arith.mulf %48, %49 : vector<2x16xf32>
    %c0_21 = arith.constant 0 : index
    %c0_22 = arith.constant 0 : index
    %51 = vector.load %arg1[%c0_21, %c0_22] : memref<2x16xf32, #tpu.memory_space<vmem>>, vector<2x16xf32>
    %cst_23 = arith.constant 1.000000e+00 : f32
    %52 = vector.broadcast %cst_23 : f32 to vector<2x16xf32>
    %53 = arith.subf %51, %52 : vector<2x16xf32>
    %cst_24 = arith.constant 1.000000e+09 : f32
    %54 = vector.broadcast %cst_24 : f32 to vector<2x16xf32>
    %55 = arith.mulf %53, %54 : vector<2x16xf32>
    %56 = arith.addf %50, %55 : vector<2x16xf32>
    %cst_25 = arith.constant dense<0xFF800000> : vector<2xf32>
    %57 = vector.multi_reduction <maximumf>, %56, %cst_25 [1] : vector<2x16xf32> to vector<2xf32>
    %58 = vector.shape_cast %57 : vector<2xf32> to vector<2x1xf32>
    %59 = vector.broadcast %58 : vector<2x1xf32> to vector<2x16xf32>
    %60 = arith.subf %56, %59 : vector<2x16xf32>
    %61 = math.exp %60 : vector<2x16xf32>
    %cst_26 = arith.constant dense<0.000000e+00> : vector<2xf32>
    %62 = vector.multi_reduction <add>, %61, %cst_26 [1] : vector<2x16xf32> to vector<2xf32>
    %63 = vector.shape_cast %62 : vector<2xf32> to vector<2x1xf32>
    %64 = vector.broadcast %63 : vector<2x1xf32> to vector<2x16xf32>
    %65 = arith.divf %61, %64 : vector<2x16xf32>
    %66 = arith.truncf %65 : vector<2x16xf32> to vector<2x16xbf16>
    %67 = arith.truncf %40 : vector<16x128xf32> to vector<16x128xbf16>
    %cst_27 = arith.constant dense<0.000000e+00> : vector<2x128xf32>
    %68 = tpu.matmul %66, %67, %cst_27 {dimension_numbers = #tpu.dot_dimension_numbers<[1], [0], [0], [1], [0, 0, 1, 1], [], []>} : vector<2x16xbf16>, vector<16x128xbf16>, vector<2x128xf32> -> vector<2x128xf32>
    %c0_28 = arith.constant 0 : index
    %c384 = arith.constant 384 : index
    %69 = vector.load %arg3[%c0_28, %c384] : memref<128x512xbf16, #tpu.memory_space<vmem>>, vector<128x128xbf16>
    %70 = arith.truncf %68 : vector<2x128xf32> to vector<2x128xbf16>
    %cst_29 = arith.constant dense<0.000000e+00> : vector<2x128xf32>
    %71 = tpu.matmul %70, %69, %cst_29 {dimension_numbers = #tpu.dot_dimension_numbers<[1], [0], [0], [1], [0, 0, 1, 1], [], []>} : vector<2x128xbf16>, vector<128x128xbf16>, vector<2x128xf32> -> vector<2x128xf32>
    %72 = arith.addf %41, %71 : vector<2x128xf32>
    %cst_30 = arith.constant dense<0.000000e+00> : vector<2xf32>
    %73 = vector.multi_reduction <add>, %72, %cst_30 [1] : vector<2x128xf32> to vector<2xf32>
    %74 = vector.shape_cast %73 : vector<2xf32> to vector<2x1xf32>
    %cst_31 = arith.constant 3.125000e-02 : f32
    %75 = vector.broadcast %cst_31 : f32 to vector<2x1xf32>
    %76 = arith.mulf %74, %75 : vector<2x1xf32>
    %77 = vector.broadcast %76 : vector<2x1xf32> to vector<2x128xf32>
    %78 = arith.subf %72, %77 : vector<2x128xf32>
    %79 = vector.broadcast %5 : vector<1x128xf32> to vector<2x128xf32>
    %80 = arith.mulf %78, %79 : vector<2x128xf32>
    %81 = arith.mulf %80, %80 : vector<2x128xf32>
    %cst_32 = arith.constant dense<0.000000e+00> : vector<2xf32>
    %82 = vector.multi_reduction <add>, %81, %cst_32 [1] : vector<2x128xf32> to vector<2xf32>
    %83 = vector.shape_cast %82 : vector<2xf32> to vector<2x1xf32>
    %cst_33 = arith.constant 3.125000e-02 : f32
    %84 = vector.broadcast %cst_33 : f32 to vector<2x1xf32>
    %85 = arith.mulf %83, %84 : vector<2x1xf32>
    %cst_34 = arith.constant 9.99999974E-6 : f32
    %86 = vector.broadcast %cst_34 : f32 to vector<2x1xf32>
    %87 = arith.addf %85, %86 : vector<2x1xf32>
    %88 = math.rsqrt %87 : vector<2x1xf32>
    %89 = vector.broadcast %88 : vector<2x1xf32> to vector<2x128xf32>
    %90 = arith.mulf %80, %89 : vector<2x128xf32>
    %91 = vector.broadcast %8 : vector<1x128xf32> to vector<2x128xf32>
    %92 = arith.mulf %90, %91 : vector<2x128xf32>
    %93 = vector.broadcast %9 : vector<1x128xf32> to vector<2x128xf32>
    %94 = arith.addf %92, %93 : vector<2x128xf32>
    %c0_35 = arith.constant 0 : index
    %c0_36 = arith.constant 0 : index
    %95 = vector.load %arg4[%c0_35, %c0_36] : memref<128x128xbf16, #tpu.memory_space<vmem>>, vector<128x128xbf16>
    %96 = arith.truncf %94 : vector<2x128xf32> to vector<2x128xbf16>
    %cst_37 = arith.constant dense<0.000000e+00> : vector<2x128xf32>
    %97 = tpu.matmul %96, %95, %cst_37 {dimension_numbers = #tpu.dot_dimension_numbers<[1], [0], [0], [1], [0, 0, 1, 1], [], []>} : vector<2x128xbf16>, vector<128x128xbf16>, vector<2x128xf32> -> vector<2x128xf32>
    %98 = vector.broadcast %10 : vector<1x128xf32> to vector<2x128xf32>
    %99 = arith.addf %97, %98 : vector<2x128xf32>
    %100 = arith.mulf %99, %99 : vector<2x128xf32>
    %101 = arith.mulf %99, %100 : vector<2x128xf32>
    %cst_38 = arith.constant 4.471500e-02 : f32
    %102 = vector.broadcast %cst_38 : f32 to vector<2x128xf32>
    %103 = arith.mulf %102, %101 : vector<2x128xf32>
    %104 = arith.addf %99, %103 : vector<2x128xf32>
    %cst_39 = arith.constant 0.797884583 : f32
    %105 = vector.broadcast %cst_39 : f32 to vector<2x128xf32>
    %106 = arith.mulf %105, %104 : vector<2x128xf32>
    %107 = math.tanh %106 : vector<2x128xf32>
    %cst_40 = arith.constant 1.000000e+00 : f32
    %108 = vector.broadcast %cst_40 : f32 to vector<2x128xf32>
    %109 = arith.addf %108, %107 : vector<2x128xf32>
    %cst_41 = arith.constant 5.000000e-01 : f32
    %110 = vector.broadcast %cst_41 : f32 to vector<2x128xf32>
    %111 = arith.mulf %110, %109 : vector<2x128xf32>
    %112 = arith.mulf %99, %111 : vector<2x128xf32>
    %c0_42 = arith.constant 0 : index
    %c0_43 = arith.constant 0 : index
    %113 = vector.load %arg5[%c0_42, %c0_43] : memref<128x128xbf16, #tpu.memory_space<vmem>>, vector<128x128xbf16>
    %114 = arith.truncf %112 : vector<2x128xf32> to vector<2x128xbf16>
    %cst_44 = arith.constant dense<0.000000e+00> : vector<2x128xf32>
    %115 = tpu.matmul %114, %113, %cst_44 {dimension_numbers = #tpu.dot_dimension_numbers<[1], [0], [0], [1], [0, 0, 1, 1], [], []>} : vector<2x128xbf16>, vector<128x128xbf16>, vector<2x128xf32> -> vector<2x128xf32>
    %116 = arith.addf %72, %115 : vector<2x128xf32>
    %117 = vector.broadcast %11 : vector<1x128xf32> to vector<2x128xf32>
    %118 = arith.addf %116, %117 : vector<2x128xf32>
    %c0_45 = arith.constant 0 : index
    %c0_46 = arith.constant 0 : index
    %119 = vector.load %arg6[%c0_45, %c0_46] : memref<128x128xbf16, #tpu.memory_space<vmem>>, vector<128x128xbf16>
    %120 = arith.truncf %118 : vector<2x128xf32> to vector<2x128xbf16>
    %cst_47 = arith.constant dense<0.000000e+00> : vector<2x128xf32>
    %121 = tpu.matmul %120, %119, %cst_47 {dimension_numbers = #tpu.dot_dimension_numbers<[1], [0], [0], [1], [0, 0, 1, 1], [], []>} : vector<2x128xbf16>, vector<128x128xbf16>, vector<2x128xf32> -> vector<2x128xf32>
    %122 = vector.broadcast %12 : vector<1x128xf32> to vector<2x128xf32>
    %123 = arith.addf %121, %122 : vector<2x128xf32>
    %cst_48 = arith.constant 0.000000e+00 : f32
    %124 = vector.broadcast %cst_48 : f32 to vector<2x128xf32>
    %125 = arith.maximumf %123, %124 : vector<2x128xf32>
    %c0_49 = arith.constant 0 : index
    %c0_50 = arith.constant 0 : index
    %126 = vector.load %arg7[%c0_49, %c0_50] : memref<128x128xbf16, #tpu.memory_space<vmem>>, vector<128x128xbf16>
    %127 = arith.truncf %125 : vector<2x128xf32> to vector<2x128xbf16>
    %cst_51 = arith.constant dense<0.000000e+00> : vector<2x128xf32>
    %128 = tpu.matmul %127, %126, %cst_51 {dimension_numbers = #tpu.dot_dimension_numbers<[1], [0], [0], [1], [0, 0, 1, 1], [], []>} : vector<2x128xbf16>, vector<128x128xbf16>, vector<2x128xf32> -> vector<2x128xf32>
    %129 = vector.broadcast %13 : vector<1x128xf32> to vector<2x128xf32>
    %130 = arith.addf %128, %129 : vector<2x128xf32>
    %c0_52 = arith.constant 0 : index
    %c0_53 = arith.constant 0 : index
    %131 = vector.load %arg8[%c0_52, %c0_53] : memref<2x128xf32, #tpu.memory_space<vmem>>, vector<2x128xf32>
    tpu.vector_store %arg8[%c0_52, %c0_53], %130 {strides = array<i32>} : memref<2x128xf32, #tpu.memory_space<vmem>>, vector<2x128xf32>,
    return
  }
}

</mosaic_0001>

<llo_original>
// kernel: merge_model_v_forward.1
$region0: #{merge_model_v_forward.1}
  #allocation0 [shape = 'u32[]', space=smem, size = 0x4, offset = 0x4, fixed_abs, tag = 'smem constant byte address 0x4 - core index']
  #allocation1 [shape = 'u32[72,128]{1,0:T(1,128)}', space=vmem, size = 0x9000, scoped, tag = 'internal scratch']
  %s0 = inlined_call_operand.vmem [shape: f32[16,128], index: 0, kind: input, shape index: {}]
  %s1 = inlined_call_operand.vmem [shape: f32[2,16], index: 1, kind: input, shape index: {}]
  %s2 = inlined_call_operand.vmem [shape: f32[8,128], index: 2, kind: input, shape index: {}]
  %s3 = inlined_call_operand.hbm [shape: bf16[128,512], index: 3, kind: input, shape index: {}]
  %s4 = inlined_call_operand.vmem [shape: bf16[128,128], index: 4, kind: input, shape index: {}]
  %s5 = inlined_call_operand.vmem [shape: bf16[128,128], index: 5, kind: input, shape index: {}]
  %s6 = inlined_call_operand.vmem [shape: bf16[128,128], index: 6, kind: input, shape index: {}]
  %s7 = inlined_call_operand.hbm [shape: bf16[128,128], index: 7, kind: input, shape index: {}]
  %s8 = inlined_call_operand.hbm [shape: f32[2,128], index: 8, kind: output, shape index: {}]
  %s9 = sld [smem:[#allocation0]]
  $region50: #{merge_model_v_forward.1} parent=0
    _
  %s11 = ssub.s32 1, %s9
  %s12 = scalar_select 0, %s11, %s9
  $region1: #{merge_model_v_forward.1} parent=0
    #allocation2 [shape = 'u8[131072]{0}', space=vmem, size = 0x20000, scoped, tag = 'input window, operand 3, single buffered']
    #allocation3 [shape = 's32[1]{0}', space=sflag, size = 0x4, scoped, tag = 'scoped memory for merge_model_v_forward.1']
    #allocation4 [shape = 's32[1]{0}', space=sflag, size = 0x4, scoped, tag = 'scoped memory for merge_model_v_forward.1']
    #allocation5 [shape = 'u8[32768]{0}', space=vmem, size = 0x8000, scoped, tag = 'input window, operand 7, single buffered']
    #allocation6 [shape = 's32[1]{0}', space=sflag, size = 0x4, scoped, tag = 'scoped memory for merge_model_v_forward.1']
    #allocation7 [shape = 'u8[1024]{0}', space=vmem, size = 0x400, scoped, tag = 'output window, operand 0, single buffered']
    %13 = vsyncpa [#allocation3], 0
    %14 = vsyncpa [#allocation6], 0
    %15 = vsyncpa [#allocation4], 0
    // Predicated region
    $region2: #{merge_model_v_forward.1} parent=1 // pred_check
      _
    $region3: #{merge_model_v_forward.1} parent=1 // pred_check_branch
      %17 = sbr.rel (0) target = $region5
    $region4: #{merge_model_v_forward.1} parent=1 // pred_region
      _
    $region5: #{merge_model_v_forward.1} parent=1 // pred_fallthru
      _
    // Predicated region
    $region6: #{merge_model_v_forward.1} parent=1 // pred_check
      _
    $region7: #{merge_model_v_forward.1} parent=1 // pred_check_branch
      %19 = sbr.rel (0) target = $region9
    $region8: #{merge_model_v_forward.1} parent=1 // pred_region
      _
    $region9: #{merge_model_v_forward.1} parent=1 // pred_fallthru
      _
    // Predicated region
    $region10: #{merge_model_v_forward.1} parent=1 // pred_check
      _
    $region11: #{merge_model_v_forward.1} parent=1 // pred_check_branch
      %21 = sbr.rel (0) target = $region13
    $region12: #{merge_model_v_forward.1} parent=1 // pred_region
      _
    $region13: #{merge_model_v_forward.1} parent=1 // pred_fallthru
      _
    // Predicated region
    $region14: #{merge_model_v_forward.1} parent=1 // pred_check
      _
    $region15: #{merge_model_v_forward.1} parent=1 // pred_check_branch
      %23 = sbr.rel (0) target = $region17
    $region16: #{merge_model_v_forward.1} parent=1 // pred_region
      %25 = vsyncadd [#allocation3], 0
      %s26 = sshll.u32 %s3, 4
      %s27 = int_to_ptr.hbm [resolvable:$true] %s26
      %s28 = sshll.u32 [#allocation2], 4
      %s29 = int_to_ptr.vmem [resolvable:$true] %s28
      %34 = dma.hbm_to_vmem [thread:$0]  %s27, 4096, %s29, [#allocation3], 256, 256, 16
    $region17: #{merge_model_v_forward.1} parent=1 // pred_fallthru
      _
    // Predicated region
    $region18: #{merge_model_v_forward.1} parent=1 // pred_check
      _
    $region19: #{merge_model_v_forward.1} parent=1 // pred_check_branch
      %36 = sbr.rel (0) target = $region21
    $region20: #{merge_model_v_forward.1} parent=1 // pred_region
      _
    $region21: #{merge_model_v_forward.1} parent=1 // pred_fallthru
      _
    // Predicated region
    $region22: #{merge_model_v_forward.1} parent=1 // pred_check
      _
    $region23: #{merge_model_v_forward.1} parent=1 // pred_check_branch
      %38 = sbr.rel (0) target = $region25
    $region24: #{merge_model_v_forward.1} parent=1 // pred_region
      _
    $region25: #{merge_model_v_forward.1} parent=1 // pred_fallthru
      _
    // Predicated region
    $region26: #{merge_model_v_forward.1} parent=1 // pred_check
      _
    $region27: #{merge_model_v_forward.1} parent=1 // pred_check_branch
      %40 = sbr.rel (0) target = $region29
    $region28: #{merge_model_v_forward.1} parent=1 // pred_region
      _
    $region29: #{merge_model_v_forward.1} parent=1 // pred_fallthru
      _
    // Predicated region
    $region30: #{merge_model_v_forward.1} parent=1 // pred_check
      _
    $region31: #{merge_model_v_forward.1} parent=1 // pred_check_branch
      %42 = sbr.rel (0) target = $region33
    $region32: #{merge_model_v_forward.1} parent=1 // pred_region
      %44 = vsyncadd [#allocation6], 0
      %s45 = sshll.u32 %s7, 4
      %s46 = int_to_ptr.hbm [resolvable:$true] %s45
      %s47 = sshll.u32 [#allocation5], 4
      %s48 = int_to_ptr.vmem [resolvable:$true] %s47
      %53 = dma.hbm_to_vmem [thread:$0]  %s46, 1024, %s48, [#allocation6], 64, 64, 4
    $region33: #{merge_model_v_forward.1} parent=1 // pred_fallthru
      _
    // Predicated region
    $region34: #{merge_model_v_forward.1} parent=1 // pred_check
      _
    $region35: #{merge_model_v_forward.1} parent=1 // pred_check_branch
      %55 = sbr.rel (0) target = $region37
    $region36: #{merge_model_v_forward.1} parent=1 // pred_region
      %57 = dma.done [#allocation3], 4096
    $region37: #{merge_model_v_forward.1} parent=1 // pred_fallthru
      _
    // Predicated region
    $region38: #{merge_model_v_forward.1} parent=1 // pred_check
      _
    $region39: #{merge_model_v_forward.1} parent=1 // pred_check_branch
      %59 = sbr.rel (0) target = $region41
    $region40: #{merge_model_v_forward.1} parent=1 // pred_region
      %61 = dma.done [#allocation6], 1024
    $region41: #{merge_model_v_forward.1} parent=1 // pred_fallthru
      _
    %v63 = vld [vmem:[%s0] sm:$0xff]
    %v64 = vld [vmem:[%s0 + $0x8] sm:$0xff]
    %v65 = vlaneseq
    %v66 = vand.u32 %v65, 127
    %vm67 = vcmp.lt.s32.totalorder %v66, 32
    %v68 = vsel %vm67, 1, 0
    %v69 = vcvt.s32.f32 %v68
    %v70 = vld [vmem:[%s2] sm:$0x1]
    %v71 = vld [vmem:[%s2 + $0x1] sm:$0x1]
    %v72 = vld [vmem:[%s2 + $0x2] sm:$0x1]
    %v73 = vld [vmem:[%s2 + $0x3] sm:$0x1]
    %v74 = vld [vmem:[%s2 + $0x4] sm:$0x1]
    %v75 = vld [vmem:[%s2 + $0x5] sm:$0x1]
    %v76 = vld [vmem:[%s2 + $0x6] sm:$0x1]
    %v77 = vld [vmem:[%s2 + $0x7] sm:$0x1]
    %78 = vadd.xlane.f32.xlu0 %v63
    %v79 = vpop.xlane.xlu0 %78
    %80 = vadd.xlane.f32.xlu0 %v64
    %v81 = vpop.xlane.xlu0 %80
    %v82 = vmul.f32 %v79, 0.03125
    %v83 = vmul.f32 %v81, 0.03125
    %v84 = vsub.f32 %v63, %v82
    %v85 = vsub.f32 %v64, %v83
    %v86 = vmul.f32 %v84, %v69
    %v87 = vmul.f32 %v85, %v69
    %v88 = vmul.f32 %v86, %v86
    %v89 = vmul.f32 %v87, %v87
    %90 = vadd.xlane.f32.xlu0 %v88
    %v91 = vpop.xlane.xlu0 %90
    %92 = vadd.xlane.f32.xlu0 %v89
    %v93 = vpop.xlane.xlu0 %92
    %v94 = vmul.f32 %v91, 0.03125
    %v95 = vmul.f32 %v93, 0.03125
    %v96 = vadd.f32 %v94, 1e-05
    %v97 = vadd.f32 %v95, 1e-05
    %v98 = vrsqrt.pop %v96
    %v99 = vmul.f32 %v98, %v96
    %v100 = vmul.f32 %v99, %v98
    %v101 = vmul.f32 0.5, %v100
    %v102 = vsub.f32 1.5, %v101
    %v103 = vmul.f32 %v98, %v102
    %vm104 = vweird.f32 %v96
    %vm105 = vweird.f32 %v98
    %vm106 = vmor %vm104, %vm105
    %v107 = vsel %vm106, %v98, %v103
    %v108 = vrsqrt.pop %v97
    %v109 = vmul.f32 %v108, %v97
    %v110 = vmul.f32 %v109, %v108
    %v111 = vmul.f32 0.5, %v110
    %v112 = vsub.f32 1.5, %v111
    %v113 = vmul.f32 %v108, %v112
    %vm114 = vweird.f32 %v97
    %vm115 = vweird.f32 %v108
    %vm116 = vmor %vm114, %vm115
    %v117 = vsel %vm116, %v108, %v113
    %v118 = vmul.f32 %v86, %v107
    %v119 = vmul.f32 %v87, %v117
    %v120 = vperm.slane %v70, 0
    %v121 = vmul.f32 %v118, %v120
    %v122 = vmul.f32 %v119, %v120
    %v123 = vperm.slane %v71, 0
    %v124 = vadd.f32 %v121, %v123
    %v125 = vadd.f32 %v122, %v123
    %v126 = vld [vmem:[#allocation2] sm:$0xff]
    %v127 = vld [vmem:[#allocation2 + $0x10] sm:$0xff]
    %v128 = vld [vmem:[#allocation2 + $0x20] sm:$0xff]
    %v129 = vld [vmem:[#allocation2 + $0x30] sm:$0xff]
    %v130 = vld [vmem:[#allocation2 + $0x40] sm:$0xff]
    %v131 = vld [vmem:[#allocation2 + $0x50] sm:$0xff]
    %v132 = vld [vmem:[#allocation2 + $0x60] sm:$0xff]
    %v133 = vld [vmem:[#allocation2 + $0x70] sm:$0xff]
    %v134 = vld [vmem:[#allocation2 + $0x80] sm:$0xff]
    %v135 = vld [vmem:[#allocation2 + $0x90] sm:$0xff]
    %v136 = vld [vmem:[#allocation2 + $0xa0] sm:$0xff]
    %v137 = vld [vmem:[#allocation2 + $0xb0] sm:$0xff]
    %v138 = vld [vmem:[#allocation2 + $0xc0] sm:$0xff]
    %v139 = vld [vmem:[#allocation2 + $0xd0] sm:$0xff]
    %v140 = vld [vmem:[#allocation2 + $0xe0] sm:$0xff]
    %v141 = vld [vmem:[#allocation2 + $0xf0] sm:$0xff]
    %v142 = vpack.c.bf16 %v125, %v124
    %v159 = vunpack.c.l.b16 %v126
    %v160 = vunpack.c.h.b16 %v126
    %v161 = vunpack.c.l.b16 %v127
    %v162 = vunpack.c.h.b16 %v127
    %v163 = vunpack.c.l.b16 %v128
    %v164 = vunpack.c.h.b16 %v128
    %v165 = vunpack.c.l.b16 %v129
    %v166 = vunpack.c.h.b16 %v129
    %v167 = vunpack.c.l.b16 %v130
    %v168 = vunpack.c.h.b16 %v130
    %v169 = vunpack.c.l.b16 %v131
    %v170 = vunpack.c.h.b16 %v131
    %v171 = vunpack.c.l.b16 %v132
    %v172 = vunpack.c.h.b16 %v132
    %v173 = vunpack.c.l.b16 %v133
    %v174 = vunpack.c.h.b16 %v133
    %v175 = vunpack.c.l.b16 %v134
    %v176 = vunpack.c.h.b16 %v134
    %v177 = vunpack.c.l.b16 %v135
    %v178 = vunpack.c.h.b16 %v135
    %v179 = vunpack.c.l.b16 %v136
    %v180 = vunpack.c.h.b16 %v136
    %v181 = vunpack.c.l.b16 %v137
    %v182 = vunpack.c.h.b16 %v137
    %v183 = vunpack.c.l.b16 %v138
    %v184 = vunpack.c.h.b16 %v138
    %v185 = vunpack.c.l.b16 %v139
    %v186 = vunpack.c.h.b16 %v139
    %v187 = vunpack.c.l.b16 %v140
    %v188 = vunpack.c.h.b16 %v140
    %v189 = vunpack.c.l.b16 %v141
    %v190 = vunpack.c.h.b16 %v141
    %v191 = vpack.c.b16 %v161, %v159
    %v192 = vpack.c.b16 %v162, %v160
    %v193 = vpack.c.b16 %v165, %v163
    %v194 = vpack.c.b16 %v166, %v164
    %v195 = vpack.c.b16 %v169, %v167
    %v196 = vpack.c.b16 %v170, %v168
    %v197 = vpack.c.b16 %v173, %v171
    %v198 = vpack.c.b16 %v174, %v172
    %v199 = vpack.c.b16 %v177, %v175
    %v200 = vpack.c.b16 %v178, %v176
    %v201 = vpack.c.b16 %v181, %v179
    %v202 = vpack.c.b16 %v182, %v180
    %v203 = vpack.c.b16 %v185, %v183
    %v204 = vpack.c.b16 %v186, %v184
    %v205 = vpack.c.b16 %v189, %v187
    %v206 = vpack.c.b16 %v190, %v188
    %223 = vmatpush.bf16.msra.mxu0 %v205
    %224 = vmatpush.bf16.msra.mxu0 %v203
    %225 = vmatpush.bf16.msra.mxu0 %v201
    %226 = vmatpush.bf16.msra.mxu0 %v199
    %227 = vmatpush.bf16.msra.mxu0 %v197
    %228 = vmatpush.bf16.msra.mxu0 %v195
    %229 = vmatpush.bf16.msra.mxu0 %v193
    %230 = vmatpush.bf16.msra.mxu0 %v191
    %231 = vmatmul.bf16.gmra.mxu0 %v142
    %v232 = vpop.f32.mrf.mxu0
    %v233 = vadd.f32 0.0, %v232
    %v234 = vpop.f32.mrf.mxu0
    %v235 = vadd.f32 0.0, %v234
    %236 = vdwg.mxu0
    %237 = vmatpush.bf16.msra.mxu0 %v206
    %238 = vmatpush.bf16.msra.mxu0 %v204
    %239 = vmatpush.bf16.msra.mxu0 %v202
    %240 = vmatpush.bf16.msra.mxu0 %v200
    %241 = vmatpush.bf16.msra.mxu0 %v198
    %242 = vmatpush.bf16.msra.mxu0 %v196
    %243 = vmatpush.bf16.msra.mxu0 %v194
    %244 = vmatpush.bf16.msra.mxu0 %v192
    %245 = vmatmul.bf16.gmra.mxu0 %v142
    %v246 = vpop.f32.mrf.mxu0
    %v247 = vadd.f32 0.0, %v246
    %v248 = vpop.f32.mrf.mxu0
    %v249 = vadd.f32 0.0, %v248
    %250 = vdwg.mxu0
    %v251 = vld [vmem:[#allocation2 + $0x8] sm:$0xf]
    %v252 = vld [vmem:[#allocation2 + $0x18] sm:$0xf]
    %v253 = vld [vmem:[#allocation2 + $0x28] sm:$0xf]
    %v254 = vld [vmem:[#allocation2 + $0x38] sm:$0xf]
    %v255 = vld [vmem:[#allocation2 + $0x48] sm:$0xf]
    %v256 = vld [vmem:[#allocation2 + $0x58] sm:$0xf]
    %v257 = vld [vmem:[#allocation2 + $0x68] sm:$0xf]
    %v258 = vld [vmem:[#allocation2 + $0x78] sm:$0xf]
    %v259 = vld [vmem:[#allocation2 + $0x88] sm:$0xf]
    %v260 = vld [vmem:[#allocation2 + $0x98] sm:$0xf]
    %v261 = vld [vmem:[#allocation2 + $0xa8] sm:$0xf]
    %v262 = vld [vmem:[#allocation2 + $0xb8] sm:$0xf]
    %v263 = vld [vmem:[#allocation2 + $0xc8] sm:$0xf]
    %v264 = vld [vmem:[#allocation2 + $0xd8] sm:$0xf]
    %v265 = vld [vmem:[#allocation2 + $0xe8] sm:$0xf]
    %v266 = vld [vmem:[#allocation2 + $0xf8] sm:$0xf]
    %v267 = vpack.c.bf16 %v124, %v124
    %v284 = vunpack.c.l.b16 %v251
    %v285 = vunpack.c.l.b16 %v252
    %v286 = vunpack.c.l.b16 %v253
    %v287 = vunpack.c.l.b16 %v254
    %v288 = vunpack.c.l.b16 %v255
    %v289 = vunpack.c.l.b16 %v256
    %v290 = vunpack.c.l.b16 %v257
    %v291 = vunpack.c.l.b16 %v258
    %v292 = vunpack.c.l.b16 %v259
    %v293 = vunpack.c.l.b16 %v260
    %v294 = vunpack.c.l.b16 %v261
    %v295 = vunpack.c.l.b16 %v262
    %v296 = vunpack.c.l.b16 %v263
    %v297 = vunpack.c.l.b16 %v264
    %v298 = vunpack.c.l.b16 %v265
    %v299 = vunpack.c.l.b16 %v266
    %v300 = vpack.c.b16 %v285, %v284
    %v301 = vpack.c.b16 %v287, %v286
    %v302 = vpack.c.b16 %v289, %v288
    %v303 = vpack.c.b16 %v291, %v290
    %v304 = vpack.c.b16 %v293, %v292
    %v305 = vpack.c.b16 %v295, %v294
    %v306 = vpack.c.b16 %v297, %v296
    %v307 = vpack.c.b16 %v299, %v298
    %316 = vmatpush.bf16.msra.mxu0 %v307
    %317 = vmatpush.bf16.msra.mxu0 %v306
    %318 = vmatpush.bf16.msra.mxu0 %v305
    %319 = vmatpush.bf16.msra.mxu0 %v304
    %320 = vmatpush.bf16.msra.mxu0 %v303
    %321 = vmatpush.bf16.msra.mxu0 %v302
    %322 = vmatpush.bf16.msra.mxu0 %v301
    %323 = vmatpush.bf16.msra.mxu0 %v300
    %324 = vmatmul.bf16.gmra.mxu0 %v267
    %v325 = vpop.f32.mrf.mxu0
    %v326 = vadd.f32 0.0, %v325
    %v327 = vpop.f32.mrf.mxu0
    %328 = vdwg.mxu0
    %v329 = vpack.c.bf16 %v326, %v326
    %v330 = vpack.c.bf16 %v235, %v233
    %331 = vmatpush.bf16.xpose.msra.mxu0 0
    %332 = vmatpush.bf16.xpose.msra.mxu0 0
    %333 = vmatpush.bf16.xpose.msra.mxu0 0
    %334 = vmatpush.bf16.xpose.msra.mxu0 0
    %335 = vmatpush.bf16.xpose.msra.mxu0 0
    %336 = vmatpush.bf16.xpose.msra.mxu0 0
    %337 = vmatpush.bf16.xpose.msra.mxu0 0
    %338 = vmatpush.bf16.xpose.msra.mxu0 %v330
    %339 = vmatmul.bf16.gmra.mxu0 %v329
    %v340 = vpop.f32.mrf.mxu0
    %v341 = vadd.f32 0.0, %v340
    %v342 = vpop.f32.mrf.mxu0
    %343 = vdwg.mxu0
    %v344 = vmul.f32 %v341, 0.17677669
    %v345 = vld [vmem:[%s1] sm:$0x3]
    %v346 = vsub.f32 %v345, 1.0
    %v347 = vmul.f32 %v346, 1e+09
    %v348 = vadd.f32 %v344, %v347
    %vm349 = vcmask 123904
    %v350 = vsel %vm349, %v348, -inf
    %351 = vmax.xlane.f32.xlu0 %v350
    %v352 = vpop.xlane.xlu0 %351
    %v353 = vsub.f32 %v348, %v352
    %v354 = vmul.f32 %v353, 1.442695
    %v355 = vpow.pop %v354
    %v356 = vsel %vm349, %v355, 0.0
    %357 = vadd.xlane.f32.xlu0 %v356
    %v358 = vpop.xlane.xlu0 %357
    %v359 = vrcp.pop %v358
    %v360 = vmul.f32 %v358, %v359
    %v361 = vsub.f32 1.0, %v360
    %v362 = vmul.f32 %v359, %v361
    %v363 = vadd.f32 %v359, %v362
    %vm364 = vweird.f32 %v358
    %vm365 = vweird.f32 %v359
    %vm366 = vmor %vm364, %vm365
    %v367 = vsel %vm366, %v359, %v363
    %v368 = vand.u32 2147483647, %v358
    %vm369 = vcmp.eq.f32.partialorder %v368, 8.507059e+37
    %v370 = vand.u32 %v358, 2147483648
    %v371 = vor.u32 1.1754944e-38, %v370
    %v372 = vsel %vm369, %v371, %v367
    %v373 = vmul.f32 %v355, %v372
    %v374 = vpack.c.bf16 %v373, %v373
    %v375 = vpack.c.bf16 %v249, %v247
    %vm376 = vcmask 130048
    %v378 = vsel %vm376, %v374, 0
    %380 = vmatpush.bf16.msra.mxu0 0
    %381 = vmatpush.bf16.msra.mxu0 0
    %382 = vmatpush.bf16.msra.mxu0 0
    %383 = vmatpush.bf16.msra.mxu0 0
    %384 = vmatpush.bf16.msra.mxu0 0
    %385 = vmatpush.bf16.msra.mxu0 0
    %386 = vmatpush.bf16.msra.mxu0 0
    %387 = vmatpush.bf16.msra.mxu0 %v375
    %388 = vmatmul.bf16.gmra.mxu0 %v378
    %v389 = vpop.f32.mrf.mxu0
    %v390 = vadd.f32 0.0, %v389
    %v391 = vpop.f32.mrf.mxu0
    %392 = vdwg.mxu0
    %v393 = vld [vmem:[#allocation2 + $0xc] sm:$0xf]
    %v394 = vld [vmem:[#allocation2 + $0x1c] sm:$0xf]
    %v395 = vld [vmem:[#allocation2 + $0x2c] sm:$0xf]
    %v396 = vld [vmem:[#allocation2 + $0x3c] sm:$0xf]
    %v397 = vld [vmem:[#allocation2 + $0x4c] sm:$0xf]
    %v398 = vld [vmem:[#allocation2 + $0x5c] sm:$0xf]
    %v399 = vld [vmem:[#allocation2 + $0x6c] sm:$0xf]
    %v400 = vld [vmem:[#allocation2 + $0x7c] sm:$0xf]
    %v401 = vld [vmem:[#allocation2 + $0x8c] sm:$0xf]
    %v402 = vld [vmem:[#allocation2 + $0x9c] sm:$0xf]
    %v403 = vld [vmem:[#allocation2 + $0xac] sm:$0xf]
    %v404 = vld [vmem:[#allocation2 + $0xbc] sm:$0xf]
    %v405 = vld [vmem:[#allocation2 + $0xcc] sm:$0xf]
    %v406 = vld [vmem:[#allocation2 + $0xdc] sm:$0xf]
    %v407 = vld [vmem:[#allocation2 + $0xec] sm:$0xf]
    %v408 = vld [vmem:[#allocation2 + $0xfc] sm:$0xf]
    %v409 = vpack.c.bf16 %v390, %v390
    %v426 = vunpack.c.l.b16 %v393
    %v427 = vunpack.c.l.b16 %v394
    %v428 = vunpack.c.l.b16 %v395
    %v429 = vunpack.c.l.b16 %v396
    %v430 = vunpack.c.l.b16 %v397
    %v431 = vunpack.c.l.b16 %v398
    %v432 = vunpack.c.l.b16 %v399
    %v433 = vunpack.c.l.b16 %v400
    %v434 = vunpack.c.l.b16 %v401
    %v435 = vunpack.c.l.b16 %v402
    %v436 = vunpack.c.l.b16 %v403
    %v437 = vunpack.c.l.b16 %v404
    %v438 = vunpack.c.l.b16 %v405
    %v439 = vunpack.c.l.b16 %v406
    %v440 = vunpack.c.l.b16 %v407
    %v441 = vunpack.c.l.b16 %v408
    %v442 = vpack.c.b16 %v427, %v426
    %v443 = vpack.c.b16 %v429, %v428
    %v444 = vpack.c.b16 %v431, %v430
    %v445 = vpack.c.b16 %v433, %v432
    %v446 = vpack.c.b16 %v435, %v434
    %v447 = vpack.c.b16 %v437, %v436
    %v448 = vpack.c.b16 %v439, %v438
    %v449 = vpack.c.b16 %v441, %v440
    %458 = vmatpush.bf16.msra.mxu0 %v449
    %459 = vmatpush.bf16.msra.mxu0 %v448
    %460 = vmatpush.bf16.msra.mxu0 %v447
    %461 = vmatpush.bf16.msra.mxu0 %v446
    %462 = vmatpush.bf16.msra.mxu0 %v445
    %463 = vmatpush.bf16.msra.mxu0 %v444
    %464 = vmatpush.bf16.msra.mxu0 %v443
    %465 = vmatpush.bf16.msra.mxu0 %v442
    %466 = vmatmul.bf16.gmra.mxu0 %v409
    %v467 = vpop.f32.mrf.mxu0
    %v468 = vadd.f32 0.0, %v467
    %v469 = vpop.f32.mrf.mxu0
    %470 = vdwg.mxu0
    %v471 = vadd.f32 %v63, %v468
    %vm472 = vcmask 1041408
    %v473 = vsel %vm472, %v471, 0.0
    %474 = vadd.xlane.f32.xlu0 %v473
    %v475 = vpop.xlane.xlu0 %474
    %v476 = vmul.f32 %v475, 0.03125
    %v477 = vsub.f32 %v471, %v476
    %v478 = vmul.f32 %v477, %v69
    %v479 = vmul.f32 %v478, %v478
    %v480 = vsel %vm472, %v479, 0.0
    %481 = vadd.xlane.f32.xlu0 %v480
    %v482 = vpop.xlane.xlu0 %481
    %v483 = vmul.f32 %v482, 0.03125
    %v484 = vadd.f32 %v483, 1e-05
    %v485 = vrsqrt.pop %v484
    %v486 = vmul.f32 %v485, %v484
    %v487 = vmul.f32 %v486, %v485
    %v488 = vmul.f32 0.5, %v487
    %v489 = vsub.f32 1.5, %v488
    %v490 = vmul.f32 %v485, %v489
    %vm491 = vweird.f32 %v484
    %vm492 = vweird.f32 %v485
    %vm493 = vmor %vm491, %vm492
    %v494 = vsel %vm493, %v485, %v490
    %v495 = vmul.f32 %v478, %v494
    %v496 = vperm.slane %v72, 0
    %v497 = vmul.f32 %v495, %v496
    %v498 = vperm.slane %v73, 0
    %v499 = vadd.f32 %v497, %v498
    %v500 = vld [vmem:[%s4] sm:$0xf]
    %v501 = vld [vmem:[%s4 + $0x4] sm:$0xf]
    %v502 = vld [vmem:[%s4 + $0x8] sm:$0xf]
    %v503 = vld [vmem:[%s4 + $0xc] sm:$0xf]
    %v504 = vld [vmem:[%s4 + $0x10] sm:$0xf]
    %v505 = vld [vmem:[%s4 + $0x14] sm:$0xf]
    %v506 = vld [vmem:[%s4 + $0x18] sm:$0xf]
    %v507 = vld [vmem:[%s4 + $0x1c] sm:$0xf]
    %v508 = vld [vmem:[%s4 + $0x20] sm:$0xf]
    %v509 = vld [vmem:[%s4 + $0x24] sm:$0xf]
    %v510 = vld [vmem:[%s4 + $0x28] sm:$0xf]
    %v511 = vld [vmem:[%s4 + $0x2c] sm:$0xf]
    %v512 = vld [vmem:[%s4 + $0x30] sm:$0xf]
    %v513 = vld [vmem:[%s4 + $0x34] sm:$0xf]
    %v514 = vld [vmem:[%s4 + $0x38] sm:$0xf]
    %v515 = vld [vmem:[%s4 + $0x3c] sm:$0xf]
    %v516 = vpack.c.bf16 %v499, %v499
    %v517 = vperm.slane %v74, 0
    %v534 = vunpack.c.l.b16 %v500
    %v535 = vunpack.c.l.b16 %v501
    %v536 = vunpack.c.l.b16 %v502
    %v537 = vunpack.c.l.b16 %v503
    %v538 = vunpack.c.l.b16 %v504
    %v539 = vunpack.c.l.b16 %v505
    %v540 = vunpack.c.l.b16 %v506
    %v541 = vunpack.c.l.b16 %v507
    %v542 = vunpack.c.l.b16 %v508
    %v543 = vunpack.c.l.b16 %v509
    %v544 = vunpack.c.l.b16 %v510
    %v545 = vunpack.c.l.b16 %v511
    %v546 = vunpack.c.l.b16 %v512
    %v547 = vunpack.c.l.b16 %v513
    %v548 = vunpack.c.l.b16 %v514
    %v549 = vunpack.c.l.b16 %v515
    %v550 = vpack.c.b16 %v535, %v534
    %v551 = vpack.c.b16 %v537, %v536
    %v552 = vpack.c.b16 %v539, %v538
    %v553 = vpack.c.b16 %v541, %v540
    %v554 = vpack.c.b16 %v543, %v542
    %v555 = vpack.c.b16 %v545, %v544
    %v556 = vpack.c.b16 %v547, %v546
    %v557 = vpack.c.b16 %v549, %v548
    %566 = vmatpush.bf16.msra.mxu0 %v557
    %567 = vmatpush.bf16.msra.mxu0 %v556
    %568 = vmatpush.bf16.msra.mxu0 %v555
    %569 = vmatpush.bf16.msra.mxu0 %v554
    %570 = vmatpush.bf16.msra.mxu0 %v553
    %571 = vmatpush.bf16.msra.mxu0 %v552
    %572 = vmatpush.bf16.msra.mxu0 %v551
    %573 = vmatpush.bf16.msra.mxu0 %v550
    %574 = vmatmul.bf16.gmra.mxu0 %v516
    %v575 = vpop.f32.mrf.mxu0
    %v576 = vadd.f32 %v517, %v575
    %v577 = vpop.f32.mrf.mxu0
    %578 = vdwg.mxu0
    %v579 = vmul.f32 %v576, %v576
    %v580 = vmul.f32 %v576, %v579
    %v581 = vmul.f32 %v580, 0.044715
    %v582 = vadd.f32 %v576, %v581
    %v583 = vmul.f32 %v582, 0.7978846
    %v584 = vtanh.pop %v583
    %v585 = vadd.f32 %v584, 1.0
    %v586 = vmul.f32 %v585, 0.5
    %v587 = vmul.f32 %v576, %v586
    %v588 = vld [vmem:[%s5] sm:$0xf]
    %v589 = vld [vmem:[%s5 + $0x4] sm:$0xf]
    %v590 = vld [vmem:[%s5 + $0x8] sm:$0xf]
    %v591 = vld [vmem:[%s5 + $0xc] sm:$0xf]
    %v592 = vld [vmem:[%s5 + $0x10] sm:$0xf]
    %v593 = vld [vmem:[%s5 + $0x14] sm:$0xf]
    %v594 = vld [vmem:[%s5 + $0x18] sm:$0xf]
    %v595 = vld [vmem:[%s5 + $0x1c] sm:$0xf]
    %v596 = vld [vmem:[%s5 + $0x20] sm:$0xf]
    %v597 = vld [vmem:[%s5 + $0x24] sm:$0xf]
    %v598 = vld [vmem:[%s5 + $0x28] sm:$0xf]
    %v599 = vld [vmem:[%s5 + $0x2c] sm:$0xf]
    %v600 = vld [vmem:[%s5 + $0x30] sm:$0xf]
    %v601 = vld [vmem:[%s5 + $0x34] sm:$0xf]
    %v602 = vld [vmem:[%s5 + $0x38] sm:$0xf]
    %v603 = vld [vmem:[%s5 + $0x3c] sm:$0xf]
    %v604 = vpack.c.bf16 %v587, %v587
    %v621 = vunpack.c.l.b16 %v588
    %v622 = vunpack.c.l.b16 %v589
    %v623 = vunpack.c.l.b16 %v590
    %v624 = vunpack.c.l.b16 %v591
    %v625 = vunpack.c.l.b16 %v592
    %v626 = vunpack.c.l.b16 %v593
    %v627 = vunpack.c.l.b16 %v594
    %v628 = vunpack.c.l.b16 %v595
    %v629 = vunpack.c.l.b16 %v596
    %v630 = vunpack.c.l.b16 %v597
    %v631 = vunpack.c.l.b16 %v598
    %v632 = vunpack.c.l.b16 %v599
    %v633 = vunpack.c.l.b16 %v600
    %v634 = vunpack.c.l.b16 %v601
    %v635 = vunpack.c.l.b16 %v602
    %v636 = vunpack.c.l.b16 %v603
    %v637 = vpack.c.b16 %v622, %v621
    %v638 = vpack.c.b16 %v624, %v623
    %v639 = vpack.c.b16 %v626, %v625
    %v640 = vpack.c.b16 %v628, %v627
    %v641 = vpack.c.b16 %v630, %v629
    %v642 = vpack.c.b16 %v632, %v631
    %v643 = vpack.c.b16 %v634, %v633
    %v644 = vpack.c.b16 %v636, %v635
    %653 = vmatpush.bf16.msra.mxu0 %v644
    %654 = vmatpush.bf16.msra.mxu0 %v643
    %655 = vmatpush.bf16.msra.mxu0 %v642
    %656 = vmatpush.bf16.msra.mxu0 %v641
    %657 = vmatpush.bf16.msra.mxu0 %v640
    %658 = vmatpush.bf16.msra.mxu0 %v639
    %659 = vmatpush.bf16.msra.mxu0 %v638
    %660 = vmatpush.bf16.msra.mxu0 %v637
    %661 = vmatmul.bf16.gmra.mxu0 %v604
    %v662 = vpop.f32.mrf.mxu0
    %v663 = vadd.f32 0.0, %v662
    %v664 = vpop.f32.mrf.mxu0
    %665 = vdwg.mxu0
    %v666 = vadd.f32 %v471, %v663
    %v667 = vperm.slane %v75, 0
    %v668 = vadd.f32 %v666, %v667
    %v669 = vld [vmem:[%s6] sm:$0xf]
    %v670 = vld [vmem:[%s6 + $0x4] sm:$0xf]
    %v671 = vld [vmem:[%s6 + $0x8] sm:$0xf]
    %v672 = vld [vmem:[%s6 + $0xc] sm:$0xf]
    %v673 = vld [vmem:[%s6 + $0x10] sm:$0xf]
    %v674 = vld [vmem:[%s6 + $0x14] sm:$0xf]
    %v675 = vld [vmem:[%s6 + $0x18] sm:$0xf]
    %v676 = vld [vmem:[%s6 + $0x1c] sm:$0xf]
    %v677 = vld [vmem:[%s6 + $0x20] sm:$0xf]
    %v678 = vld [vmem:[%s6 + $0x24] sm:$0xf]
    %v679 = vld [vmem:[%s6 + $0x28] sm:$0xf]
    %v680 = vld [vmem:[%s6 + $0x2c] sm:$0xf]
    %v681 = vld [vmem:[%s6 + $0x30] sm:$0xf]
    %v682 = vld [vmem:[%s6 + $0x34] sm:$0xf]
    %v683 = vld [vmem:[%s6 + $0x38] sm:$0xf]
    %v684 = vld [vmem:[%s6 + $0x3c] sm:$0xf]
    %v685 = vpack.c.bf16 %v668, %v668
    %v686 = vperm.slane %v76, 0
    %v703 = vunpack.c.l.b16 %v669
    %v704 = vunpack.c.l.b16 %v670
    %v705 = vunpack.c.l.b16 %v671
    %v706 = vunpack.c.l.b16 %v672
    %v707 = vunpack.c.l.b16 %v673
    %v708 = vunpack.c.l.b16 %v674
    %v709 = vunpack.c.l.b16 %v675
    %v710 = vunpack.c.l.b16 %v676
    %v711 = vunpack.c.l.b16 %v677
    %v712 = vunpack.c.l.b16 %v678
    %v713 = vunpack.c.l.b16 %v679
    %v714 = vunpack.c.l.b16 %v680
    %v715 = vunpack.c.l.b16 %v681
    %v716 = vunpack.c.l.b16 %v682
    %v717 = vunpack.c.l.b16 %v683
    %v718 = vunpack.c.l.b16 %v684
    %v719 = vpack.c.b16 %v704, %v703
    %v720 = vpack.c.b16 %v706, %v705
    %v721 = vpack.c.b16 %v708, %v707
    %v722 = vpack.c.b16 %v710, %v709
    %v723 = vpack.c.b16 %v712, %v711
    %v724 = vpack.c.b16 %v714, %v713
    %v725 = vpack.c.b16 %v716, %v715
    %v726 = vpack.c.b16 %v718, %v717
    %735 = vmatpush.bf16.msra.mxu0 %v726
    %736 = vmatpush.bf16.msra.mxu0 %v725
    %737 = vmatpush.bf16.msra.mxu0 %v724
    %738 = vmatpush.bf16.msra.mxu0 %v723
    %739 = vmatpush.bf16.msra.mxu0 %v722
    %740 = vmatpush.bf16.msra.mxu0 %v721
    %741 = vmatpush.bf16.msra.mxu0 %v720
    %742 = vmatpush.bf16.msra.mxu0 %v719
    %743 = vmatmul.bf16.gmra.mxu0 %v685
    %v744 = vpop.f32.mrf.mxu0
    %v745 = vadd.f32 %v686, %v744
    %v746 = vpop.f32.mrf.mxu0
    %747 = vdwg.mxu0
    %v748 = vmax.f32 %v745, 0.0
    %v749 = vld [vmem:[#allocation5] sm:$0xf]
    %v750 = vld [vmem:[#allocation5 + $0x4] sm:$0xf]
    %v751 = vld [vmem:[#allocation5 + $0x8] sm:$0xf]
    %v752 = vld [vmem:[#allocation5 + $0xc] sm:$0xf]
    %v753 = vld [vmem:[#allocation5 + $0x10] sm:$0xf]
    %v754 = vld [vmem:[#allocation5 + $0x14] sm:$0xf]
    %v755 = vld [vmem:[#allocation5 + $0x18] sm:$0xf]
    %v756 = vld [vmem:[#allocation5 + $0x1c] sm:$0xf]
    %v757 = vld [vmem:[#allocation5 + $0x20] sm:$0xf]
    %v758 = vld [vmem:[#allocation5 + $0x24] sm:$0xf]
    %v759 = vld [vmem:[#allocation5 + $0x28] sm:$0xf]
    %v760 = vld [vmem:[#allocation5 + $0x2c] sm:$0xf]
    %v761 = vld [vmem:[#allocation5 + $0x30] sm:$0xf]
    %v762 = vld [vmem:[#allocation5 + $0x34] sm:$0xf]
    %v763 = vld [vmem:[#allocation5 + $0x38] sm:$0xf]
    %v764 = vld [vmem:[#allocation5 + $0x3c] sm:$0xf]
    %v765 = vpack.c.bf16 %v748, %v748
    %v766 = vperm.slane %v77, 0
    %v783 = vunpack.c.l.b16 %v749
    %v784 = vunpack.c.l.b16 %v750
    %v785 = vunpack.c.l.b16 %v751
    %v786 = vunpack.c.l.b16 %v752
    %v787 = vunpack.c.l.b16 %v753
    %v788 = vunpack.c.l.b16 %v754
    %v789 = vunpack.c.l.b16 %v755
    %v790 = vunpack.c.l.b16 %v756
    %v791 = vunpack.c.l.b16 %v757
    %v792 = vunpack.c.l.b16 %v758
    %v793 = vunpack.c.l.b16 %v759
    %v794 = vunpack.c.l.b16 %v760
    %v795 = vunpack.c.l.b16 %v761
    %v796 = vunpack.c.l.b16 %v762
    %v797 = vunpack.c.l.b16 %v763
    %v798 = vunpack.c.l.b16 %v764
    %v799 = vpack.c.b16 %v784, %v783
    %v800 = vpack.c.b16 %v786, %v785
    %v801 = vpack.c.b16 %v788, %v787
    %v802 = vpack.c.b16 %v790, %v789
    %v803 = vpack.c.b16 %v792, %v791
    %v804 = vpack.c.b16 %v794, %v793
    %v805 = vpack.c.b16 %v796, %v795
    %v806 = vpack.c.b16 %v798, %v797
    %815 = vmatpush.bf16.msra.mxu0 %v806
    %816 = vmatpush.bf16.msra.mxu0 %v805
    %817 = vmatpush.bf16.msra.mxu0 %v804
    %818 = vmatpush.bf16.msra.mxu0 %v803
    %819 = vmatpush.bf16.msra.mxu0 %v802
    %820 = vmatpush.bf16.msra.mxu0 %v801
    %821 = vmatpush.bf16.msra.mxu0 %v800
    %822 = vmatpush.bf16.msra.mxu0 %v799
    %823 = vmatmul.bf16.gmra.mxu0 %v765
    %v824 = vpop.f32.mrf.mxu0
    %v825 = vadd.f32 %v766, %v824
    %v826 = vpop.f32.mrf.mxu0
    %827 = vdwg.mxu0
    %828 = vst [vmem:[#allocation7] sm:$0x3] %v825
    // Predicated region
    $region42: #{merge_model_v_forward.1} parent=1 // pred_check
      _
    $region43: #{merge_model_v_forward.1} parent=1 // pred_check_branch
      %830 = sbr.rel (0) target = $region45
    $region44: #{merge_model_v_forward.1} parent=1 // pred_region
      %832 = vsyncadd [#allocation4], 0
      %s834 = sshll.u32 [#allocation7], 4
      %s835 = int_to_ptr.vmem [resolvable:$true] %s834
      %s836 = sshll.u32 %s8, 4
      %s837 = int_to_ptr.hbm [resolvable:$true] %s836
      %839 = dma.vmem_to_hbm [thread:$0]  %s835, 32, %s837, [#allocation4]
    $region45: #{merge_model_v_forward.1} parent=1 // pred_fallthru
      _
    // Predicated region
    $region46: #{merge_model_v_forward.1} parent=1 // pred_check
      _
    $region47: #{merge_model_v_forward.1} parent=1 // pred_check_branch
      %841 = sbr.rel (0) target = $region49
    $region48: #{merge_model_v_forward.1} parent=1 // pred_region
      %843 = dma.done [#allocation4], 32
    $region49: #{merge_model_v_forward.1} parent=1 // pred_fallthru
      _
    %844 = vsyncpa [#allocation3], 1
    %845 = vsyncpa [#allocation6], 1
    %846 = vsyncpa [#allocation4], 1

</llo_original>
